<compile_context>
chip_gen: v7x
topology: tpu7x:2x2x1
jax: 0.10.0
libtpu: 0.0.40
codegen_flags: <defaults>
</compile_context>

<pallas_src>
import math

import jax
import jax.numpy as jnp
from jax.experimental import pallas as pl
from jax.experimental.pallas import tpu as pltpu


def _darts_input_choice_kernel(w_ref, *refs):
    # w_ref:      (N,) f32 softmax weights in SMEM (scalar prefetch)
    # refs[:-1]:  N candidate tiles, each (TR, 128) in VMEM
    # refs[-1]:   output tile (TR, 128)
    x_refs, o_ref = refs[:-1], refs[-1]
    acc = x_refs[0][...].astype(jnp.float32) * w_ref[0]
    for i in range(1, len(x_refs)):
        acc = acc + x_refs[i][...].astype(jnp.float32) * w_ref[i]
    o_ref[...] = acc.astype(o_ref.dtype)


def _round_up(x, m):
    return (x + m - 1) // m * m


def _vmem_capacity_bytes():
    try:
        cap = getattr(pltpu.get_tpu_info(), "vmem_capacity_bytes", None)
        if cap:
            return int(cap)
    except Exception:
        pass
    return 64 << 20  # conservative (v7x per-TC capacity)


def _pick_tr(r, sub, tr_max_rows):
    """Largest block-row count <= tr_max_rows that is a sublane multiple,
    preferring an even number of grid steps (balances v7x's two cores)."""
    if r <= sub:
        return r                                   # full-extent single block
    tr_max_rows = max(sub, min(tr_max_rows, _round_up(r, sub)) // sub * sub)
    tr = tr_max_rows
    while tr >= sub:
        if pl.cdiv(r, tr) % 2 == 0:
            return tr
        tr -= sub
    return tr_max_rows                             # no even split exists


def darts_input_choice(inputs, alpha, *, small_fallback_bytes=1 << 20):
    """inputs: list of N arrays with identical shape/dtype; alpha: (N,)."""
    n = len(inputs)
    assert n >= 1 and alpha.shape == (n,)
    inp_shape = inputs[0].shape
    dtype = inputs[0].dtype
    for x in inputs[1:]:
        assert x.shape == inp_shape and x.dtype == dtype, (
            "all candidates must share shape and dtype")
    itemsize = jnp.dtype(dtype).itemsize

    # Softmax hoisted out of the per-tile body: computed once.
    weights = jax.nn.softmax(alpha.astype(jnp.float32), axis=-1)

    m = math.prod(inp_shape) if inp_shape else 1

    # Tiny problems: XLA's fused elementwise beats kernel-launch overhead.
    if n * m * itemsize < small_fallback_bytes:
        acc = inputs[0].astype(jnp.float32) * weights[0]
        for i in range(1, n):
            acc = acc + inputs[i].astype(jnp.float32) * weights[i]
        return acc.astype(dtype)

    # dtype-native sublane multiple: 8 (f32) / 16 (bf16) / 32 (int8/fp8).
    sub = max(8, 32 // itemsize)

    # Lane-dense 2-D slab: rows of 128 lanes.  When numel is a multiple of 128
    # the reshape is a free view (no pad copy, no output slice); otherwise pad
    # only up to the sublane-aligned row count (not up to the block size).
    if m % 128 == 0:
        r = m // 128
        padded_m = m
    else:
        r = _round_up(pl.cdiv(m, 128), sub)
        padded_m = r * 128

    # Generation-aware VMEM budget (128 MiB parts vs v7x's 64 MiB per TC).
    vmem_cap = _vmem_capacity_bytes()
    vmem_budget = (96 << 20) if vmem_cap >= (128 << 20) else (52 << 20)

    # Per-candidate block rows; double-buffered pipeline holds 2*(N+1) blocks.
    blk_bytes = max(128 * sub * itemsize, vmem_budget // (2 * (n + 1)))
    tr = _pick_tr(r, sub, blk_bytes // (128 * itemsize))
    grid_steps = pl.cdiv(r, tr)   # ragged last block is masked by Pallas

    def to_slab(x):
        flat = x.reshape(-1)
        if padded_m != m:
            flat = jnp.pad(flat, (0, padded_m - m))
        return flat.reshape(r, 128)

    slabs = [to_slab(x) for x in inputs]

    block_bytes = tr * 128 * itemsize
    vmem_limit = 2 * (n + 1) * block_bytes + (4 << 20)
    vmem_limit = min(max(32 << 20, vmem_limit), vmem_cap)

    grid_spec = pltpu.PrefetchScalarGridSpec(
        num_scalar_prefetch=1,                         # weights -> SMEM
        grid=(grid_steps,),
        in_specs=[pl.BlockSpec((tr, 128), lambda j, w: (j, 0))
                  for _ in range(n)],
        out_specs=pl.BlockSpec((tr, 128), lambda j, w: (j, 0)),
    )

    out = pl.pallas_call(
        _darts_input_choice_kernel,
        out_shape=jax.ShapeDtypeStruct((r, 128), dtype),
        grid_spec=grid_spec,
        compiler_params=pltpu.CompilerParams(
            dimension_semantics=("parallel",),
            vmem_limit_bytes=int(vmem_limit),
        ),
        cost_estimate=pl.CostEstimate(
            flops=(2 * n - 1) * m,
            transcendentals=0,
            bytes_accessed=(n + 1) * m * itemsize,
        ),
    )(weights, *slabs)

    flat = out.reshape(-1)
    if padded_m != m:
        flat = flat[:m]
    return flat.reshape(inp_shape)


def _reference(inputs, alpha):
    stacked = jnp.stack(inputs, axis=0)
    w = jax.nn.softmax(alpha.astype(jnp.float32), axis=-1)
    w = w.reshape((-1,) + (1,) * (stacked.ndim - 1))
    return jnp.sum(stacked * w, axis=0).astype(inputs[0].dtype)


# TODO(synk): export()/named_parameters() are host-side module bookkeeping
# (argsort of alpha), not part of the forward pass, so no kernel is needed.

if __name__ == "__main__":
    key = jax.random.PRNGKey(0)
    n_candidates = 3
    B, C, H, W = 2, 4, 16, 16      # NCHW candidate shape

    k_alpha, *k_inputs = jax.random.split(key, 1 + n_candidates)
    # Deterministic init, matching nn.Parameter(torch.randn(N) * 0.001)
    alpha = jax.random.normal(k_alpha, (n_candidates,), dtype=jnp.float32) * 0.001
    inputs = [jax.random.normal(k, (B, C, H, W), dtype=jnp.float32)
              for k in k_inputs]

    ref = _reference(inputs, alpha)

    # 1) Force the Pallas path at the demo shape (numel % 128 == 0 -> no pad).
    out = jax.block_until_ready(
        darts_input_choice(inputs, alpha, small_fallback_bytes=0))
    assert out.shape == (B, C, H, W)
    assert jnp.allclose(out, ref, atol=1e-5, rtol=1e-5), "mismatch (pallas)"

    # 2) Default path (tiny-input XLA fallback) must agree too.
    out_fb = jax.block_until_ready(darts_input_choice(inputs, alpha))
    assert jnp.allclose(out_fb, ref, atol=1e-5, rtol=1e-5), "mismatch (fallback)"

    # 3) Non-128-multiple numel exercises the pad / masked-store / slice path.
    shp = (2, 3, 11, 7)
    k_extra = jax.random.split(jax.random.PRNGKey(0), n_candidates)
    inputs2 = [jax.random.normal(k, shp, dtype=jnp.float32) for k in k_extra]
    out2 = jax.block_until_ready(
        darts_input_choice(inputs2, alpha, small_fallback_bytes=0))
    assert jnp.allclose(out2, _reference(inputs2, alpha),
                        atol=1e-5, rtol=1e-5), "mismatch (padded)"

    print("KERNEL_OK")
</pallas_src>

<mosaic_0001>
module attributes {stable_mosaic.version = 11 : i64} {
  func.func @_darts_input_choice_kernel(%arg0: i32, %arg1: memref<3xf32, #tpu.memory_space<smem>>, %arg2: memref<8x128xf32, #tpu.memory_space<vmem>>, %arg3: memref<8x128xf32, #tpu.memory_space<vmem>>, %arg4: memref<8x128xf32, #tpu.memory_space<vmem>>, %arg5: memref<8x128xf32, #tpu.memory_space<vmem>>) attributes {dimension_semantics = [#tpu.dimension_semantics<parallel>], iteration_bounds = array<i64: 2>, scalar_prefetch = 1 : i64, scratch_operands = 0 : i64, tpu.core_type = #tpu.core_type<tc>, window_params = [{transform_indices = @transform_0, window_bounds = array<i64: 8, 128>}, {transform_indices = @transform_1, window_bounds = array<i64: 8, 128>}, {transform_indices = @transform_2, window_bounds = array<i64: 8, 128>}, {transform_indices = @transform_3, window_bounds = array<i64: 8, 128>}]} {
    %c0 = arith.constant 0 : index
    %c0_0 = arith.constant 0 : index
    %0 = vector.load %arg2[%c0, %c0_0] : memref<8x128xf32, #tpu.memory_space<vmem>>, vector<8x128xf32>
    %c0_1 = arith.constant 0 : index
    %1 = memref.load %arg1[%c0_1] : memref<3xf32, #tpu.memory_space<smem>>
    %2 = vector.broadcast %1 : f32 to vector<8x128xf32>
    %3 = arith.mulf %0, %2 : vector<8x128xf32>
    %c0_2 = arith.constant 0 : index
    %c0_3 = arith.constant 0 : index
    %4 = vector.load %arg3[%c0_2, %c0_3] : memref<8x128xf32, #tpu.memory_space<vmem>>, vector<8x128xf32>
    %c1 = arith.constant 1 : index
    %5 = memref.load %arg1[%c1] : memref<3xf32, #tpu.memory_space<smem>>
    %6 = vector.broadcast %5 : f32 to vector<8x128xf32>
    %7 = arith.mulf %4, %6 : vector<8x128xf32>
    %8 = arith.addf %3, %7 : vector<8x128xf32>
    %c0_4 = arith.constant 0 : index
    %c0_5 = arith.constant 0 : index
    %9 = vector.load %arg4[%c0_4, %c0_5] : memref<8x128xf32, #tpu.memory_space<vmem>>, vector<8x128xf32>
    %c2 = arith.constant 2 : index
    %10 = memref.load %arg1[%c2] : memref<3xf32, #tpu.memory_space<smem>>
    %11 = vector.broadcast %10 : f32 to vector<8x128xf32>
    %12 = arith.mulf %9, %11 : vector<8x128xf32>
    %13 = arith.addf %8, %12 : vector<8x128xf32>
    %c0_6 = arith.constant 0 : index
    %c0_7 = arith.constant 0 : index
    %14 = vector.load %arg5[%c0_6, %c0_7] : memref<8x128xf32, #tpu.memory_space<vmem>>, vector<8x128xf32>
    tpu.vector_store %arg5[%c0_6, %c0_7], %13 {strides = array<i32>} : memref<8x128xf32, #tpu.memory_space<vmem>>, vector<8x128xf32>,
    return
  }
  func.func @transform_0(%arg0: i32, %arg1: memref<3xf32, #tpu.memory_space<smem>>) -> (i32, i32) {
    %c0_i32 = arith.constant 0 : i32
    %c0_i32_0 = arith.constant 0 : i32
    return %arg0, %c0_i32 : i32, i32
  }
  func.func @transform_1(%arg0: i32, %arg1: memref<3xf32, #tpu.memory_space<smem>>) -> (i32, i32) {
    %c0_i32 = arith.constant 0 : i32
    %c0_i32_0 = arith.constant 0 : i32
    return %arg0, %c0_i32 : i32, i32
  }
  func.func @transform_2(%arg0: i32, %arg1: memref<3xf32, #tpu.memory_space<smem>>) -> (i32, i32) {
    %c0_i32 = arith.constant 0 : i32
    %c0_i32_0 = arith.constant 0 : i32
    return %arg0, %c0_i32 : i32, i32
  }
  func.func @transform_3(%arg0: i32, %arg1: memref<3xf32, #tpu.memory_space<smem>>) -> (i32, i32) {
    %c0_i32 = arith.constant 0 : i32
    %c0_i32_0 = arith.constant 0 : i32
    return %arg0, %c0_i32 : i32, i32
  }
}

</mosaic_0001>

<llo_original>
// kernel: tpu_custom_call.1
$region0: #{tpu_custom_call.1}
  #allocation0 [shape = 'u32[]', space=smem, size = 0x4, offset = 0x4, fixed_abs, tag = 'smem constant byte address 0x4 - core index']
  #allocation1 [shape = 'u32[144,128]{1,0:T(1,128)}', space=vmem, size = 0x12000, scoped, tag = 'internal scratch']
  #allocation2 [shape = 's32[1]{0}', space=sflag, size = 0x4, scoped, tag = 'scoped memory for tpu_custom_call.1']
  #allocation3 [shape = 'u8[512]{0}', space=smem, size = 0x200, scoped, tag = 'prefetched SMEM operand 0']
  %s0 = inlined_call_operand.hbm [shape: f32[3], index: 0, kind: input, shape index: {}]
  %s1 = inlined_call_operand.hbm [shape: f32[16,128], index: 1, kind: input, shape index: {}]
  %s2 = inlined_call_operand.hbm [shape: f32[16,128], index: 2, kind: input, shape index: {}]
  %s3 = inlined_call_operand.hbm [shape: f32[16,128], index: 3, kind: input, shape index: {}]
  %s4 = inlined_call_operand.hbm [shape: f32[16,128], index: 4, kind: output, shape index: {}]
  %s5 = sld [smem:[#allocation0]]
  $region57: #{tpu_custom_call.1} parent=0
    _
  %s7 = ssub.s32 1, %s5
  %s8 = scalar_select 0, %s7, %s5
  %10 = dma.hbm_to_smem %s0, 16, [#allocation3], [#allocation2]
  %11 = dma.done [#allocation2], 16
  %12 = sfence
  $region1: #{tpu_custom_call.1} parent=0
    #allocation4 [shape = 'u8[8192]{0}', space=vmem, size = 0x2000, scoped, tag = 'input window, operand 1']
    #allocation5 [shape = 's32[2]{0}', space=sflag, size = 0x8, scoped, tag = 'scoped memory for tpu_custom_call.1']
    #allocation6 [shape = 's32[2]{0}', space=sflag, size = 0x8, scoped, tag = 'scoped memory for tpu_custom_call.1']
    #allocation7 [shape = 'u8[8192]{0}', space=vmem, size = 0x2000, scoped, tag = 'input window, operand 2']
    #allocation8 [shape = 's32[2]{0}', space=sflag, size = 0x8, scoped, tag = 'scoped memory for tpu_custom_call.1']
    #allocation9 [shape = 'u8[8192]{0}', space=vmem, size = 0x2000, scoped, tag = 'input window, operand 3']
    #allocation10 [shape = 'u8[8192]{0}', space=vmem, size = 0x2000, scoped, tag = 'output window, operand 0']
    %13 = vsyncpa [#allocation5], 0
    %s14 = scalar_lea.sflag [#allocation5], 1
    %15 = vsyncpa %s14, 0
    %16 = vsyncpa [#allocation8], 0
    %s17 = scalar_lea.sflag [#allocation8], 1
    %18 = vsyncpa %s17, 0
    %19 = vsyncpa [#allocation6], 0
    %s20 = scalar_lea.sflag [#allocation6], 1
    %21 = vsyncpa %s20, 0
    loop: start=0, step=1, limit=4
    $region2: #{tpu_custom_call.1} parent=1 // loop_pre_header
      _
    $region3: #{tpu_custom_call.1} parent=1 // loop_header
      %s23 = sphi 0, %s27
      %p24 = scmp.ge.s32.totalorder %s23, 4
      %s33 = sphi 0, %s35
      %s36 = sphi 0, %s33
      %s37 = sphi 0, %s36
      %s53 = sphi 0, %s37
      %s59 = sphi 0, %s61
      %s62 = sphi 0, %s59
      %s63 = sphi 0, %s62
      %s79 = sphi 0, %s63
      %s85 = sphi 0, %s87
      %s88 = sphi 0, %s85
      %s89 = sphi 0, %s88
      %s105 = sphi 0, %s89
      %s111 = sphi 0, %s113
      %s114 = sphi 0, %s111
      %s115 = sphi 0, %s114
      %s131 = sphi 0, %s115
    $region4: #{tpu_custom_call.1} parent=1 // loop_header_branch
      %26 = sbr.rel (%p24) target = $region8
    $region5: #{tpu_custom_call.1} parent=1 // loop_body
      %s28 = ssub.s32 %s23, 1
      %s29 = ssub.s32 %s23, 2
      %s30 = sadd.s32 %s23, 1
      %s31 = ssub.s32 %s23, %s30
      %p32 = scmp.eq.s32.totalorder %s31, 0
      %s34 = sadd.s32 %s33, 1
      %s35 = scalar_select %p32, %s33, %s34
      %p38 = pneg %p32
      %p39 = scmp.eq.s32.totalorder %s23, 1
      %p40 = por %p38, %p39
      %p41 = scmp.ne.s32.totalorder %s33, %s36
      %p42 = scmp.eq.s32.totalorder %s23, 0
      %p43 = por %p41, %p42
      %p44 = scmp.ne.s32.totalorder %s33, %s36
      %p45 = scmp.eq.s32.totalorder %s28, 1
      %p46 = por %p44, %p45
      %p47 = scmp.ne.s32.totalorder %s36, %s37
      %p48 = scmp.eq.s32.totalorder %s28, 0
      %p49 = por %p47, %p48
      %p50 = scmp.ne.s32.totalorder %s36, %s37
      %p51 = scmp.eq.s32.totalorder %s29, 1
      %p52 = por %p50, %p51
      %p54 = scmp.ne.s32.totalorder %s37, %s53
      %p55 = scmp.eq.s32.totalorder %s29, 0
      %p56 = por %p54, %p55
      %s57 = ssub.s32 %s23, %s30
      %p58 = scmp.eq.s32.totalorder %s57, 0
      %s60 = sadd.s32 %s59, 1
      %s61 = scalar_select %p58, %s59, %s60
      %p64 = pneg %p58
      %p65 = scmp.eq.s32.totalorder %s23, 1
      %p66 = por %p64, %p65
      %p67 = scmp.ne.s32.totalorder %s59, %s62
      %p68 = scmp.eq.s32.totalorder %s23, 0
      %p69 = por %p67, %p68
      %p70 = scmp.ne.s32.totalorder %s59, %s62
      %p71 = scmp.eq.s32.totalorder %s28, 1
      %p72 = por %p70, %p71
      %p73 = scmp.ne.s32.totalorder %s62, %s63
      %p74 = scmp.eq.s32.totalorder %s28, 0
      %p75 = por %p73, %p74
      %p76 = scmp.ne.s32.totalorder %s62, %s63
      %p77 = scmp.eq.s32.totalorder %s29, 1
      %p78 = por %p76, %p77
      %p80 = scmp.ne.s32.totalorder %s63, %s79
      %p81 = scmp.eq.s32.totalorder %s29, 0
      %p82 = por %p80, %p81
      %s83 = ssub.s32 %s23, %s30
      %p84 = scmp.eq.s32.totalorder %s83, 0
      %s86 = sadd.s32 %s85, 1
      %s87 = scalar_select %p84, %s85, %s86
      %p90 = pneg %p84
      %p91 = scmp.eq.s32.totalorder %s23, 1
      %p92 = por %p90, %p91
      %p93 = scmp.ne.s32.totalorder %s85, %s88
      %p94 = scmp.eq.s32.totalorder %s23, 0
      %p95 = por %p93, %p94
      %p96 = scmp.ne.s32.totalorder %s85, %s88
      %p97 = scmp.eq.s32.totalorder %s28, 1
      %p98 = por %p96, %p97
      %p99 = scmp.ne.s32.totalorder %s88, %s89
      %p100 = scmp.eq.s32.totalorder %s28, 0
      %p101 = por %p99, %p100
      %p102 = scmp.ne.s32.totalorder %s88, %s89
      %p103 = scmp.eq.s32.totalorder %s29, 1
      %p104 = por %p102, %p103
      %p106 = scmp.ne.s32.totalorder %s89, %s105
      %p107 = scmp.eq.s32.totalorder %s29, 0
      %p108 = por %p106, %p107
      %s109 = ssub.s32 %s23, %s30
      %p110 = scmp.eq.s32.totalorder %s109, 0
      %s112 = sadd.s32 %s111, 1
      %s113 = scalar_select %p110, %s111, %s112
      %p116 = pneg %p110
      %p117 = scmp.eq.s32.totalorder %s23, 1
      %p118 = por %p116, %p117
      %p119 = scmp.ne.s32.totalorder %s111, %s114
      %p120 = scmp.eq.s32.totalorder %s23, 0
      %p121 = por %p119, %p120
      %p122 = scmp.ne.s32.totalorder %s111, %s114
      %p123 = scmp.eq.s32.totalorder %s28, 1
      %p124 = por %p122, %p123
      %p125 = scmp.ne.s32.totalorder %s114, %s115
      %p126 = scmp.eq.s32.totalorder %s28, 0
      %p127 = por %p125, %p126
      %p128 = scmp.ne.s32.totalorder %s114, %s115
      %p129 = scmp.eq.s32.totalorder %s29, 1
      %p130 = por %p128, %p129
      %p132 = scmp.ne.s32.totalorder %s115, %s131
      %p133 = scmp.eq.s32.totalorder %s29, 0
      %p134 = por %p132, %p133
      %p135 = scmp.le.s32.totalorder 1, %s23
      %p136 = scmp.lt.s32.totalorder %s23, 3
      %p137 = pnand %p135, %p136
      %p138 = pneg %p137
      // Predicated region
      $region9: #{tpu_custom_call.1} parent=5 // pred_check
        _
      $region10: #{tpu_custom_call.1} parent=5 // pred_check_branch
        %140 = sbr.rel (%p137) target = $region12
      $region11: #{tpu_custom_call.1} parent=5 // pred_region
        %s141 = ssub.s32 %s23, 1
      $region12: #{tpu_custom_call.1} parent=5 // pred_fallthru
        _
      %p142 = scmp.lt.s32.totalorder %s23, 2
      // Predicated region
      $region13: #{tpu_custom_call.1} parent=5 // pred_check
        %p143 = pneg %p142
      $region14: #{tpu_custom_call.1} parent=5 // pred_check_branch
        %145 = sbr.rel (%p143) target = $region16
      $region15: #{tpu_custom_call.1} parent=5 // pred_region
        // Predicated region
        $region17: #{tpu_custom_call.1} parent=15 // pred_check
          %p146 = pneg %p43
        $region18: #{tpu_custom_call.1} parent=15 // pred_check_branch
          %148 = sbr.rel (%p146) target = $region20
        $region19: #{tpu_custom_call.1} parent=15 // pred_region
          %s149 = sand.u32 %s33, 1
          %s150 = scalar_lea.sflag [#allocation5], %s149
          %s151 = sand.u32 %s33, 1
          %s152 = smul.addr %s151, 8
          %s153 = scalar_lea.vmem [#allocation4], %s152
          %s155 = ssub.s32 128, 128
          %156 = vsyncadd %s150, %s155
          %s157 = smul.addr %s23, 128
          %s158 = scalar_lea.hbm %s1, %s157
          %s160 = sshll.u32 %s153, 4
          %s161 = int_to_ptr.vmem [resolvable:$true] %s160
          %163 = dma.hbm_to_vmem [thread:$0]  %s158, 128, %s161, %s150
        $region20: #{tpu_custom_call.1} parent=15 // pred_fallthru
          _
        // Predicated region
        $region21: #{tpu_custom_call.1} parent=15 // pred_check
          %p164 = pneg %p69
        $region22: #{tpu_custom_call.1} parent=15 // pred_check_branch
          %166 = sbr.rel (%p164) target = $region24
        $region23: #{tpu_custom_call.1} parent=15 // pred_region
          %s167 = sand.u32 %s23, 1
          %s168 = scalar_lea.sflag [#allocation8], %s167
          %s169 = sand.u32 %s59, 1
          %s170 = smul.addr %s169, 8
          %s171 = scalar_lea.vmem [#allocation7], %s170
          %s173 = ssub.s32 128, 128
          %174 = vsyncadd %s168, %s173
          %s175 = smul.addr %s23, 128
          %s176 = scalar_lea.hbm %s2, %s175
          %s178 = sshll.u32 %s171, 4
          %s179 = int_to_ptr.vmem [resolvable:$true] %s178
          %181 = dma.hbm_to_vmem [thread:$0]  %s176, 128, %s179, %s168
        $region24: #{tpu_custom_call.1} parent=15 // pred_fallthru
          _
        // Predicated region
        $region25: #{tpu_custom_call.1} parent=15 // pred_check
          %p182 = pneg %p95
        $region26: #{tpu_custom_call.1} parent=15 // pred_check_branch
          %184 = sbr.rel (%p182) target = $region28
        $region27: #{tpu_custom_call.1} parent=15 // pred_region
          %s185 = sand.u32 %s23, 1
          %s186 = scalar_lea.sflag [#allocation8], %s185
          %s187 = sand.u32 %s85, 1
          %s188 = smul.addr %s187, 8
          %s189 = scalar_lea.vmem [#allocation9], %s188
          %s191 = ssub.s32 128, 128
          %192 = vsyncadd %s186, %s191
          %s193 = smul.addr %s23, 128
          %s194 = scalar_lea.hbm %s3, %s193
          %s196 = sshll.u32 %s189, 4
          %s197 = int_to_ptr.vmem [resolvable:$true] %s196
          %199 = dma.hbm_to_vmem [thread:$0]  %s194, 128, %s197, %s186
        $region28: #{tpu_custom_call.1} parent=15 // pred_fallthru
          _
      $region16: #{tpu_custom_call.1} parent=5 // pred_fallthru
        _
      %p200 = scmp.le.s32.totalorder 1, %s23
      %p201 = scmp.lt.s32.totalorder %s23, 3
      %p202 = pnand %p200, %p201
      %p203 = pneg %p202
      // Predicated region
      $region29: #{tpu_custom_call.1} parent=5 // pred_check
        _
      $region30: #{tpu_custom_call.1} parent=5 // pred_check_branch
        %205 = sbr.rel (%p202) target = $region32
      $region31: #{tpu_custom_call.1} parent=5 // pred_region
        %s206 = ssub.s32 %s23, 1
        %s207 = sand.u32 %s36, 1
        %s208 = scalar_lea.sflag [#allocation5], %s207
        %s209 = sand.u32 %s36, 1
        %s210 = smul.addr %s209, 8
        %s211 = scalar_lea.vmem [#allocation4], %s210
        // Predicated region
        $region33: #{tpu_custom_call.1} parent=31 // pred_check
          %p212 = pneg %p49
        $region34: #{tpu_custom_call.1} parent=31 // pred_check_branch
          %214 = sbr.rel (%p212) target = $region36
        $region35: #{tpu_custom_call.1} parent=31 // pred_region
          %215 = dma.done %s208, 128
        $region36: #{tpu_custom_call.1} parent=31 // pred_fallthru
          _
        %s216 = sand.u32 %s28, 1
        %s217 = scalar_lea.sflag [#allocation8], %s216
        %s218 = sand.u32 %s62, 1
        %s219 = smul.addr %s218, 8
        %s220 = scalar_lea.vmem [#allocation7], %s219
        // Predicated region
        $region37: #{tpu_custom_call.1} parent=31 // pred_check
          %p221 = pneg %p75
        $region38: #{tpu_custom_call.1} parent=31 // pred_check_branch
          %223 = sbr.rel (%p221) target = $region40
        $region39: #{tpu_custom_call.1} parent=31 // pred_region
          %224 = dma.done %s217, 128
        $region40: #{tpu_custom_call.1} parent=31 // pred_fallthru
          _
        %s225 = sand.u32 %s28, 1
        %s226 = scalar_lea.sflag [#allocation8], %s225
        %s227 = sand.u32 %s88, 1
        %s228 = smul.addr %s227, 8
        %s229 = scalar_lea.vmem [#allocation9], %s228
        // Predicated region
        $region41: #{tpu_custom_call.1} parent=31 // pred_check
          %p230 = pneg %p101
        $region42: #{tpu_custom_call.1} parent=31 // pred_check_branch
          %232 = sbr.rel (%p230) target = $region44
        $region43: #{tpu_custom_call.1} parent=31 // pred_region
          %233 = dma.done %s226, 128
        $region44: #{tpu_custom_call.1} parent=31 // pred_fallthru
          _
        %s234 = sand.u32 %s36, 1
        %s235 = scalar_lea.sflag [#allocation5], %s234
        %s236 = sand.u32 %s36, 1
        %s237 = smul.addr %s236, 8
        %s238 = scalar_lea.vmem [#allocation4], %s237
        %p239 = pneg %p49
        %p240 = pneg %p46
        %s241 = sand.u32 %s28, 1
        %s242 = scalar_lea.sflag [#allocation8], %s241
        %s243 = sand.u32 %s62, 1
        %s244 = smul.addr %s243, 8
        %s245 = scalar_lea.vmem [#allocation7], %s244
        %p246 = pneg %p75
        %p247 = pneg %p72
        %s248 = sand.u32 %s28, 1
        %s249 = scalar_lea.sflag [#allocation8], %s248
        %s250 = sand.u32 %s88, 1
        %s251 = smul.addr %s250, 8
        %s252 = scalar_lea.vmem [#allocation9], %s251
        %p253 = pneg %p101
        %p254 = pneg %p98
        %p255 = pneg %p127
        %p256 = pneg %p124
        %s257 = sand.u32 %s114, 1
        %s258 = scalar_lea.sflag [#allocation6], %s257
        %s259 = sand.u32 %s114, 1
        %s260 = smul.addr %s259, 8
        %s261 = scalar_lea.vmem [#allocation10], %s260
        %v262 = vld [vmem:[%s211] sm:$0xff]
        %s263 = sld [smem:[#allocation3]]
        %v264 = vstv %s263
        %v265 = vmul.f32 %v262, %v264
        %v266 = vld [vmem:[%s220] sm:$0xff]
        %s267 = sld [smem:[#allocation3 + $0x1]]
        %v268 = vstv %s267
        %v269 = vmul.f32 %v266, %v268
        %v270 = vadd.f32 %v265, %v269
        %v271 = vld [vmem:[%s229] sm:$0xff]
        %s272 = sld [smem:[#allocation3 + $0x2]]
        %v273 = vstv %s272
        %v274 = vmul.f32 %v271, %v273
        %v275 = vadd.f32 %v270, %v274
        %276 = vst [vmem:[%s261] sm:$0xff] %v275
        %s277 = sand.u32 %s114, 1
        %s278 = scalar_lea.sflag [#allocation6], %s277
        %s279 = sand.u32 %s114, 1
        %s280 = smul.addr %s279, 8
        %s281 = scalar_lea.vmem [#allocation10], %s280
        // Predicated region
        $region45: #{tpu_custom_call.1} parent=31 // pred_check
          %p282 = pneg %p124
        $region46: #{tpu_custom_call.1} parent=31 // pred_check_branch
          %284 = sbr.rel (%p282) target = $region48
        $region47: #{tpu_custom_call.1} parent=31 // pred_region
          %s286 = ssub.s32 128, 128
          %287 = vsyncadd %s278, %s286
          %s288 = smul.addr %s28, 128
          %s289 = scalar_lea.hbm %s4, %s288
          %s291 = sshll.u32 %s281, 4
          %s292 = int_to_ptr.vmem [resolvable:$true] %s291
          %294 = dma.vmem_to_hbm [thread:$0]  %s292, 128, %s289, %s278
        $region48: #{tpu_custom_call.1} parent=31 // pred_fallthru
          _
      $region32: #{tpu_custom_call.1} parent=5 // pred_fallthru
        _
      %p295 = scmp.le.s32.totalorder 2, %s23
      // Predicated region
      $region49: #{tpu_custom_call.1} parent=5 // pred_check
        %p296 = pneg %p295
      $region50: #{tpu_custom_call.1} parent=5 // pred_check_branch
        %298 = sbr.rel (%p296) target = $region52
      $region51: #{tpu_custom_call.1} parent=5 // pred_region
        %s299 = ssub.s32 %s23, 2
        // Predicated region
        $region53: #{tpu_custom_call.1} parent=51 // pred_check
          %p300 = pneg %p130
        $region54: #{tpu_custom_call.1} parent=51 // pred_check_branch
          %302 = sbr.rel (%p300) target = $region56
        $region55: #{tpu_custom_call.1} parent=51 // pred_region
          %s303 = sand.u32 %s115, 1
          %s304 = scalar_lea.sflag [#allocation6], %s303
          %s305 = sand.u32 %s115, 1
          %s306 = smul.addr %s305, 8
          %s307 = scalar_lea.vmem [#allocation10], %s306
          %308 = dma.done %s304, 128
        $region56: #{tpu_custom_call.1} parent=51 // pred_fallthru
          _
      $region52: #{tpu_custom_call.1} parent=5 // pred_fallthru
        _
    $region6: #{tpu_custom_call.1} parent=1 // loop_footer
      %s27 = sadd.s32 1, %s23
    $region7: #{tpu_custom_call.1} parent=1 // loop_footer_branch
      %22 = sbr.rel target = $region3
    $region8: #{tpu_custom_call.1} parent=1 // loop_exit
      _
    %309 = vsyncpa [#allocation5], 1
    %s310 = scalar_lea.sflag [#allocation5], 1
    %311 = vsyncpa %s310, 1
    %312 = vsyncpa [#allocation8], 1
    %s313 = scalar_lea.sflag [#allocation8], 1
    %314 = vsyncpa %s313, 1
    %315 = vsyncpa [#allocation6], 1
    %s316 = scalar_lea.sflag [#allocation6], 1
    %317 = vsyncpa %s316, 1

</llo_original>
